<compile_context>
chip_gen: v6e
topology: v6e:2x2x1
jax: 0.10.0
libtpu: 0.0.40
codegen_flags: <defaults>
</compile_context>

<pallas_src>
import functools

import jax
import jax.numpy as jnp
from jax.experimental import pallas as pl
from jax.experimental.pallas import tpu as pltpu

LANE = 128
NEG_BIG = -1e30  # padded-logit filler so padded lanes vanish in the softmax


def _round_up(n, m):
    return ((n + m - 1) // m) * m


def _pick_tb(batch, block_batch):
    """Pick the batch tile size.

    - batch < 256: single whole-array tile (block dims == full array dims, so
      the (8,128) BlockSpec constraint is satisfied for any small batch).
    - batch >= 256: tiles are multiples of 256, capped at ~batch/2 so the
      "parallel" batch axis has >= 2 grid steps (v7x megacore), and at
      block_batch so intermediates stay comfortably inside VMEM.
    """
    if batch < 256:
        return batch
    tb = _round_up(min(block_batch, batch), 256)
    half = _round_up(pl.cdiv(batch, 2), 256)
    return max(256, min(tb, half))


def policy_net_kernel(x_ref, w1_ref, b1_ref, w2_ref, b2_ref, w3_ref, b3_ref,
                      out_ref):
    # x tile: (TB, D_in) -> bf16 at the MXU, f32 accumulation everywhere.
    x = x_ref[...].astype(jnp.bfloat16)

    # fc1 + relu
    h1 = jnp.dot(x, w1_ref[...], preferred_element_type=jnp.float32)
    h1 = jnp.maximum(h1 + b1_ref[...], 0.0)                     # (TB, 64) f32

    # fc2 + relu
    h2 = jnp.dot(h1.astype(jnp.bfloat16), w2_ref[...],
                 preferred_element_type=jnp.float32)
    h2 = jnp.maximum(h2 + b2_ref[...], 0.0)                     # (TB, 128) f32

    # fc3 (padded to 128 output lanes for the compute) + softmax(dim=-1).
    logits = jnp.dot(h2.astype(jnp.bfloat16), w3_ref[...],
                     preferred_element_type=jnp.float32)
    logits = logits + b3_ref[...]                               # (TB, 128) f32
    # Padded lanes carry NEG_BIG via b3 padding -> exp underflows to 0, so the
    # max / denominator only see the real out_dim logits.
    m = jnp.max(logits, axis=-1, keepdims=True)
    e = jnp.exp(logits - m)
    denom = jnp.sum(e, axis=-1, keepdims=True)
    probs = e * pl.reciprocal(denom, approx=True)               # (TB, 128) f32

    # Lane-dense transposed store: batch -> lane axis, class -> sublane axis.
    # Only the out_dim real rows are written back to HBM.
    probs_t = jnp.transpose(probs)                              # (128, TB)
    out_ref[...] = probs_t[:out_ref.shape[0], :]                # (out_dim, TB)


@functools.partial(jax.jit, static_argnames=("block_batch",))
def policy_net_forward(x, params, *, block_batch=2048):
    w1, b1, w2, b2, w3, b3 = params
    batch, in_dim = x.shape
    out_dim = w3.shape[1]

    # --- lane-dense compute: pad fc3 columns to a multiple of 128 lanes -----
    out_pad = _round_up(max(out_dim, LANE), LANE)
    w3p = jnp.zeros((w3.shape[0], out_pad), w3.dtype).at[:, :out_dim].set(w3)
    b3p = jnp.full((1, out_pad), NEG_BIG, jnp.float32).at[:, :out_dim].set(b3)

    # --- bf16 weights at the MXU; biases stay f32 ---------------------------
    w1b = w1.astype(jnp.bfloat16)
    w2b = w2.astype(jnp.bfloat16)
    w3b = w3p.astype(jnp.bfloat16)

    # --- batch tiling: no wrapper pad; Pallas clips the ragged last block ---
    tb = _pick_tb(batch, block_batch)
    grid = (pl.cdiv(batch, tb),)

    const2d = lambda i: (0, 0)  # weights/biases stay resident across the grid

    out_t = pl.pallas_call(
        policy_net_kernel,
        # Transposed, un-padded output: (out_dim, batch) f32 -> 32 B/row of
        # real probabilities instead of a 512 B/row padded block + slice.
        out_shape=jax.ShapeDtypeStruct((out_dim, batch), jnp.float32),
        grid=grid,
        in_specs=[
            pl.BlockSpec((tb, in_dim), lambda i: (i, 0)),   # x: batch-tiled
            pl.BlockSpec(w1b.shape, const2d),
            pl.BlockSpec(b1.shape, const2d),
            pl.BlockSpec(w2b.shape, const2d),
            pl.BlockSpec(b2.shape, const2d),
            pl.BlockSpec(w3b.shape, const2d),
            pl.BlockSpec(b3p.shape, const2d),
        ],
        out_specs=pl.BlockSpec((out_dim, tb), lambda i: (0, i)),
        compiler_params=pltpu.CompilerParams(
            dimension_semantics=("parallel",),       # megacore on v7x
            vmem_limit_bytes=32 * 1024 * 1024,       # safe on v5e/v6e/v7x
        ),
    )(x, w1b, b1, w2b, b2, w3b, b3p)

    # Tiny (out_dim, batch) transpose back to the PyTorch layout.
    return out_t.T


def init_params(key, input_dim, output_dim):
    k1, k2, k3, k4, k5, k6 = jax.random.split(key, 6)
    scale = 0.1
    # weights stored (in, out); biases stored (1, out) for a TPU 2-D layout
    w1 = scale * jax.random.normal(k1, (input_dim, 64), jnp.float32)
    b1 = scale * jax.random.normal(k2, (1, 64), jnp.float32)
    w2 = scale * jax.random.normal(k3, (64, 128), jnp.float32)
    b2 = scale * jax.random.normal(k4, (1, 128), jnp.float32)
    w3 = scale * jax.random.normal(k5, (128, output_dim), jnp.float32)
    b3 = scale * jax.random.normal(k6, (1, output_dim), jnp.float32)
    return (w1, b1, w2, b2, w3, b3)


def reference_forward(x, params):
    w1, b1, w2, b2, w3, b3 = params
    h1 = jnp.maximum(x @ w1 + b1, 0.0)
    h2 = jnp.maximum(h1 @ w2 + b2, 0.0)
    return jax.nn.softmax(h2 @ w3 + b3, axis=-1)


if __name__ == "__main__":
    input_dim = 32
    output_dim = 8

    key = jax.random.PRNGKey(0)
    kx, kp, kx2 = jax.random.split(key, 3)
    params = init_params(kp, input_dim, output_dim)

    # --- small-batch check (single whole-array tile path) -------------------
    batch = 8
    x = jax.random.normal(kx, (batch, input_dim), jnp.float32)
    out = jax.block_until_ready(policy_net_forward(x, params))
    ref = reference_forward(x, params)
    assert out.shape == (batch, output_dim)
    # bf16 MXU operands + approx reciprocal -> relaxed tolerance vs f32 ref
    assert jnp.allclose(out, ref, atol=5e-3, rtol=5e-2)
    assert jnp.allclose(jnp.sum(out, axis=-1), 1.0, atol=5e-3)

    # --- multi-tile check: batch=600 -> tb=512, grid=(2,), ragged last block
    #     (exercises resident weights, the parallel 2-step split for v7x, the
    #     clipped/masked ragged block, and the transposed output path).
    batch2 = 600
    x2 = jax.random.normal(kx2, (batch2, input_dim), jnp.float32)
    out2 = jax.block_until_ready(policy_net_forward(x2, params))
    ref2 = reference_forward(x2, params)
    assert out2.shape == (batch2, output_dim)
    assert jnp.allclose(out2, ref2, atol=5e-3, rtol=5e-2)
    assert jnp.allclose(jnp.sum(out2, axis=-1), 1.0, atol=5e-3)

    print("KERNEL_OK")
</pallas_src>

<mosaic_0001>
module attributes {stable_mosaic.version = 11 : i64} {
  func.func @policy_net_kernel(%arg0: i32, %arg1: memref<8x32xf32, #tpu.memory_space<vmem>>, %arg2: memref<32x64xbf16, #tpu.memory_space<vmem>>, %arg3: memref<1x64xf32, #tpu.memory_space<vmem>>, %arg4: memref<64x128xbf16, #tpu.memory_space<vmem>>, %arg5: memref<1x128xf32, #tpu.memory_space<vmem>>, %arg6: memref<128x128xbf16, #tpu.memory_space<vmem>>, %arg7: memref<1x128xf32, #tpu.memory_space<vmem>>, %arg8: memref<8x8xf32, #tpu.memory_space<vmem>>) attributes {dimension_semantics = [#tpu.dimension_semantics<parallel>], iteration_bounds = array<i64: 1>, scalar_prefetch = 0 : i64, scratch_operands = 0 : i64, tpu.core_type = #tpu.core_type<tc>, window_params = [{transform_indices = @transform_0, window_bounds = array<i64: 8, 32>}, {pipeline_mode = #tpu.pipeline_mode<synchronous>, transform_indices = @transform_1, window_bounds = array<i64: 32, 64>}, {pipeline_mode = #tpu.pipeline_mode<synchronous>, transform_indices = @transform_2, window_bounds = array<i64: 1, 64>}, {pipeline_mode = #tpu.pipeline_mode<synchronous>, transform_indices = @transform_3, window_bounds = array<i64: 64, 128>}, {pipeline_mode = #tpu.pipeline_mode<synchronous>, transform_indices = @transform_4, window_bounds = array<i64: 1, 128>}, {pipeline_mode = #tpu.pipeline_mode<synchronous>, transform_indices = @transform_5, window_bounds = array<i64: 128, 128>}, {pipeline_mode = #tpu.pipeline_mode<synchronous>, transform_indices = @transform_6, window_bounds = array<i64: 1, 128>}, {transform_indices = @transform_7, window_bounds = array<i64: 8, 8>}]} {
    %c0 = arith.constant 0 : index
    %c0_0 = arith.constant 0 : index
    %0 = vector.load %arg1[%c0, %c0_0] : memref<8x32xf32, #tpu.memory_space<vmem>>, vector<8x32xf32>
    %1 = arith.truncf %0 : vector<8x32xf32> to vector<8x32xbf16>
    %c0_1 = arith.constant 0 : index
    %c0_2 = arith.constant 0 : index
    %2 = vector.load %arg2[%c0_1, %c0_2] : memref<32x64xbf16, #tpu.memory_space<vmem>>, vector<32x64xbf16>
    %cst = arith.constant dense<0.000000e+00> : vector<8x64xf32>
    %3 = tpu.matmul %1, %2, %cst {dimension_numbers = #tpu.dot_dimension_numbers<[1], [0], [0], [1], [0, 0, 1, 1], [], []>} : vector<8x32xbf16>, vector<32x64xbf16>, vector<8x64xf32> -> vector<8x64xf32>
    %c0_3 = arith.constant 0 : index
    %c0_4 = arith.constant 0 : index
    %4 = vector.load %arg3[%c0_3, %c0_4] : memref<1x64xf32, #tpu.memory_space<vmem>>, vector<1x64xf32>
    %5 = vector.broadcast %4 : vector<1x64xf32> to vector<8x64xf32>
    %6 = arith.addf %3, %5 : vector<8x64xf32>
    %cst_5 = arith.constant 0.000000e+00 : f32
    %7 = vector.broadcast %cst_5 : f32 to vector<8x64xf32>
    %8 = arith.maximumf %6, %7 : vector<8x64xf32>
    %9 = arith.truncf %8 : vector<8x64xf32> to vector<8x64xbf16>
    %c0_6 = arith.constant 0 : index
    %c0_7 = arith.constant 0 : index
    %10 = vector.load %arg4[%c0_6, %c0_7] : memref<64x128xbf16, #tpu.memory_space<vmem>>, vector<64x128xbf16>
    %cst_8 = arith.constant dense<0.000000e+00> : vector<8x128xf32>
    %11 = tpu.matmul %9, %10, %cst_8 {dimension_numbers = #tpu.dot_dimension_numbers<[1], [0], [0], [1], [0, 0, 1, 1], [], []>} : vector<8x64xbf16>, vector<64x128xbf16>, vector<8x128xf32> -> vector<8x128xf32>
    %c0_9 = arith.constant 0 : index
    %c0_10 = arith.constant 0 : index
    %12 = vector.load %arg5[%c0_9, %c0_10] : memref<1x128xf32, #tpu.memory_space<vmem>>, vector<1x128xf32>
    %13 = vector.broadcast %12 : vector<1x128xf32> to vector<8x128xf32>
    %14 = arith.addf %11, %13 : vector<8x128xf32>
    %cst_11 = arith.constant 0.000000e+00 : f32
    %15 = vector.broadcast %cst_11 : f32 to vector<8x128xf32>
    %16 = arith.maximumf %14, %15 : vector<8x128xf32>
    %17 = arith.truncf %16 : vector<8x128xf32> to vector<8x128xbf16>
    %c0_12 = arith.constant 0 : index
    %c0_13 = arith.constant 0 : index
    %18 = vector.load %arg6[%c0_12, %c0_13] : memref<128x128xbf16, #tpu.memory_space<vmem>>, vector<128x128xbf16>
    %cst_14 = arith.constant dense<0.000000e+00> : vector<8x128xf32>
    %19 = tpu.matmul %17, %18, %cst_14 {dimension_numbers = #tpu.dot_dimension_numbers<[1], [0], [0], [1], [0, 0, 1, 1], [], []>} : vector<8x128xbf16>, vector<128x128xbf16>, vector<8x128xf32> -> vector<8x128xf32>
    %c0_15 = arith.constant 0 : index
    %c0_16 = arith.constant 0 : index
    %20 = vector.load %arg7[%c0_15, %c0_16] : memref<1x128xf32, #tpu.memory_space<vmem>>, vector<1x128xf32>
    %21 = vector.broadcast %20 : vector<1x128xf32> to vector<8x128xf32>
    %22 = arith.addf %19, %21 : vector<8x128xf32>
    %cst_17 = arith.constant dense<0xFF800000> : vector<8xf32>
    %23 = vector.multi_reduction <maximumf>, %22, %cst_17 [1] : vector<8x128xf32> to vector<8xf32>
    %24 = vector.shape_cast %23 : vector<8xf32> to vector<8x1xf32>
    %25 = vector.broadcast %24 : vector<8x1xf32> to vector<8x128xf32>
    %26 = arith.subf %22, %25 : vector<8x128xf32>
    %27 = math.exp %26 : vector<8x128xf32>
    %cst_18 = arith.constant dense<0.000000e+00> : vector<8xf32>
    %28 = vector.multi_reduction <add>, %27, %cst_18 [1] : vector<8x128xf32> to vector<8xf32>
    %29 = vector.shape_cast %28 : vector<8xf32> to vector<8x1xf32>
    %30 = tpu.reciprocal %29 {approx = true} : vector<8x1xf32> -> vector<8x1xf32>
    %31 = vector.broadcast %30 : vector<8x1xf32> to vector<8x128xf32>
    %32 = arith.mulf %27, %31 : vector<8x128xf32>
    %33 = tpu.transpose %32, [1, 0] : vector<8x128xf32> -> vector<128x8xf32>
    %34 = vector.extract_strided_slice %33 {offsets = [0, 0], sizes = [8, 8], strides = [1, 1]} : vector<128x8xf32> to vector<8x8xf32>
    %c0_19 = arith.constant 0 : index
    %c0_20 = arith.constant 0 : index
    %35 = vector.load %arg8[%c0_19, %c0_20] : memref<8x8xf32, #tpu.memory_space<vmem>>, vector<8x8xf32>
    tpu.vector_store %arg8[%c0_19, %c0_20], %34 {strides = array<i32>} : memref<8x8xf32, #tpu.memory_space<vmem>>, vector<8x8xf32>,
    return
  }
  func.func @transform_0(%arg0: i32) -> (i32, i32) {
    %c0_i32 = arith.constant 0 : i32
    %c0_i32_0 = arith.constant 0 : i32
    return %arg0, %c0_i32 : i32, i32
  }
  func.func @transform_1(%arg0: i32) -> (i32, i32) {
    %c0_i32 = arith.constant 0 : i32
    %c0_i32_0 = arith.constant 0 : i32
    %c0_i32_1 = arith.constant 0 : i32
    return %c0_i32, %c0_i32_0 : i32, i32
  }
  func.func @transform_2(%arg0: i32) -> (i32, i32) {
    %c0_i32 = arith.constant 0 : i32
    %c0_i32_0 = arith.constant 0 : i32
    %c0_i32_1 = arith.constant 0 : i32
    return %c0_i32, %c0_i32_0 : i32, i32
  }
  func.func @transform_3(%arg0: i32) -> (i32, i32) {
    %c0_i32 = arith.constant 0 : i32
    %c0_i32_0 = arith.constant 0 : i32
    %c0_i32_1 = arith.constant 0 : i32
    return %c0_i32, %c0_i32_0 : i32, i32
  }
  func.func @transform_4(%arg0: i32) -> (i32, i32) {
    %c0_i32 = arith.constant 0 : i32
    %c0_i32_0 = arith.constant 0 : i32
    %c0_i32_1 = arith.constant 0 : i32
    return %c0_i32, %c0_i32_0 : i32, i32
  }
  func.func @transform_5(%arg0: i32) -> (i32, i32) {
    %c0_i32 = arith.constant 0 : i32
    %c0_i32_0 = arith.constant 0 : i32
    %c0_i32_1 = arith.constant 0 : i32
    return %c0_i32, %c0_i32_0 : i32, i32
  }
  func.func @transform_6(%arg0: i32) -> (i32, i32) {
    %c0_i32 = arith.constant 0 : i32
    %c0_i32_0 = arith.constant 0 : i32
    %c0_i32_1 = arith.constant 0 : i32
    return %c0_i32, %c0_i32_0 : i32, i32
  }
  func.func @transform_7(%arg0: i32) -> (i32, i32) {
    %c0_i32 = arith.constant 0 : i32
    %c0_i32_0 = arith.constant 0 : i32
    return %c0_i32, %arg0 : i32, i32
  }
}

</mosaic_0001>

<llo_original>
// kernel: policy_net_forward.1
$region0: #{policy_net_forward.1}
  #allocation0 [shape = 'u32[]', space=smem, size = 0x4, offset = 0x4, fixed_abs, tag = 'smem constant byte address 0x4 - core index']
  #allocation1 [shape = 'u32[144,128]{1,0:T(1,128)}', space=vmem, size = 0x12000, scoped, tag = 'internal scratch']
  %s0 = inlined_call_operand.vmem [shape: f32[8,32], index: 0, kind: input, shape index: {}]
  %s1 = inlined_call_operand.vmem [shape: bf16[32,64], index: 1, kind: input, shape index: {}]
  %s2 = inlined_call_operand.vmem [shape: f32[1,64], index: 2, kind: input, shape index: {}]
  %s3 = inlined_call_operand.vmem [shape: bf16[64,128], index: 3, kind: input, shape index: {}]
  %s4 = inlined_call_operand.vmem [shape: f32[1,128], index: 4, kind: input, shape index: {}]
  %s5 = inlined_call_operand.vmem [shape: bf16[128,128], index: 5, kind: input, shape index: {}]
  %s6 = inlined_call_operand.vmem [shape: f32[1,128], index: 6, kind: input, shape index: {}]
  %s7 = inlined_call_operand.vmem [shape: f32[8,8], index: 7, kind: output, shape index: {}]
  %s8 = sld [smem:[#allocation0]]
  $region38: #{policy_net_forward.1} parent=0
    _
  %s10 = ssub.s32 1, %s8
  %s11 = scalar_select 0, %s10, %s8
  // Predicated region
  $region2: #{policy_net_forward.1} parent=0 // pred_check
    _
  $region3: #{policy_net_forward.1} parent=0 // pred_check_branch
    %13 = sbr.rel (0) target = $region5
  $region4: #{policy_net_forward.1} parent=0 // pred_region
    _
  $region5: #{policy_net_forward.1} parent=0 // pred_fallthru
    _
  // Predicated region
  $region6: #{policy_net_forward.1} parent=0 // pred_check
    _
  $region7: #{policy_net_forward.1} parent=0 // pred_check_branch
    %15 = sbr.rel (0) target = $region9
  $region8: #{policy_net_forward.1} parent=0 // pred_region
    _
  $region9: #{policy_net_forward.1} parent=0 // pred_fallthru
    _
  // Predicated region
  $region10: #{policy_net_forward.1} parent=0 // pred_check
    _
  $region11: #{policy_net_forward.1} parent=0 // pred_check_branch
    %17 = sbr.rel (0) target = $region13
  $region12: #{policy_net_forward.1} parent=0 // pred_region
    _
  $region13: #{policy_net_forward.1} parent=0 // pred_fallthru
    _
  // Predicated region
  $region14: #{policy_net_forward.1} parent=0 // pred_check
    _
  $region15: #{policy_net_forward.1} parent=0 // pred_check_branch
    %19 = sbr.rel (0) target = $region17
  $region16: #{policy_net_forward.1} parent=0 // pred_region
    _
  $region17: #{policy_net_forward.1} parent=0 // pred_fallthru
    _
  // Predicated region
  $region18: #{policy_net_forward.1} parent=0 // pred_check
    _
  $region19: #{policy_net_forward.1} parent=0 // pred_check_branch
    %21 = sbr.rel (0) target = $region21
  $region20: #{policy_net_forward.1} parent=0 // pred_region
    _
  $region21: #{policy_net_forward.1} parent=0 // pred_fallthru
    _
  // Predicated region
  $region22: #{policy_net_forward.1} parent=0 // pred_check
    _
  $region23: #{policy_net_forward.1} parent=0 // pred_check_branch
    %23 = sbr.rel (0) target = $region25
  $region24: #{policy_net_forward.1} parent=0 // pred_region
    _
  $region25: #{policy_net_forward.1} parent=0 // pred_fallthru
    _
  // Predicated region
  $region26: #{policy_net_forward.1} parent=0 // pred_check
    _
  $region27: #{policy_net_forward.1} parent=0 // pred_check_branch
    %25 = sbr.rel (0) target = $region29
  $region28: #{policy_net_forward.1} parent=0 // pred_region
    _
  $region29: #{policy_net_forward.1} parent=0 // pred_fallthru
    _
  %v27 = vld [vmem:[%s0] sm:$0xff]
  %v28 = vpack.c.bf16 %v27, %v27
  %v29 = vld [vmem:[%s1] sm:$0xf]
  %v30 = vld [vmem:[%s1 + $0x4] sm:$0xf]
  %v31 = vld [vmem:[%s1 + $0x8] sm:$0xf]
  %v32 = vld [vmem:[%s1 + $0xc] sm:$0xf]
  %v33 = vld [vmem:[%s2] sm:$0x1]
  %v35 = vlaneseq
  %v36 = vshrl.u32 %v35, 7
  %v37 = vsub.s32 0, %v36
  %v38 = vrot.slane %v33, %v37
  %v44 = vunpack.c.l.b16 %v29
  %v45 = vunpack.c.l.b16 %v30
  %v46 = vunpack.c.l.b16 %v31
  %v47 = vunpack.c.l.b16 %v32
  %v48 = vpack.c.b16 %v45, %v44
  %v49 = vpack.c.b16 %v47, %v46
  %vm52 = vcmask 261120
  %v54 = vsel %vm52, %v28, 0
  %56 = vmatprep.subr.bf16.mxu0 0
  %57 = vmatpush1.bf16.msra.mxu0 0
  %58 = vmatprep.subr.bf16.mxu0 0
  %59 = vmatpush1.bf16.msra.mxu0 0
  %60 = vmatprep.subr.bf16.mxu0 0
  %61 = vmatpush1.bf16.msra.mxu0 0
  %62 = vmatprep.subr.bf16.mxu0 0
  %63 = vmatpush1.bf16.msra.mxu0 0
  %64 = vmatprep.subr.bf16.mxu0 0
  %65 = vmatpush1.bf16.msra.mxu0 0
  %66 = vmatprep.subr.bf16.mxu0 0
  %67 = vmatpush1.bf16.msra.mxu0 0
  %68 = vmatprep.subr.bf16.mxu0 0
  %69 = vmatpush1.bf16.msra.mxu0 %v49
  %70 = vmatprep.subr.bf16.mxu0 0
  %71 = vmatpush1.bf16.msra.mxu0 %v48
  %72 = vmatprep.subr.bf16.mxu0 0
  %73 = vmatpush2.bf16.msra.mxu0 0
  %74 = vmatprep.subr.bf16.mxu0 0
  %75 = vmatpush2.bf16.msra.mxu0 0
  %76 = vmatprep.subr.bf16.mxu0 0
  %77 = vmatpush2.bf16.msra.mxu0 0
  %78 = vmatprep.subr.bf16.mxu0 0
  %79 = vmatpush2.bf16.msra.mxu0 0
  %80 = vmatprep.subr.bf16.mxu0 0
  %81 = vmatpush2.bf16.msra.mxu0 0
  %82 = vmatprep.subr.bf16.mxu0 0
  %83 = vmatpush2.bf16.msra.mxu0 0
  %84 = vmatprep.subr.bf16.mxu0 0
  %85 = vmatpush2.bf16.msra.mxu0 0
  %86 = vmatprep.subr.bf16.mxu0 0
  %87 = vmatpush2.bf16.msra.mxu0 0
  %88 = vmatprep.mubr.bf16.mxu0 0
  %89 = vmatmul.mubr.bf16.gmra.mxu0 %v54
  %v90 = vpop.f32.mrf.mxu0
  %v91 = vadd.f32 %v38, %v90
  %v92 = vpop.f32.mrf.mxu0
  %v93 = vpop.f32.mrf.mxu0
  %v94 = vpop.f32.mrf.mxu0
  %95 = vdwg.mxu0
  %v96 = vmax.f32 %v91, 0.0
  %v97 = vpack.c.bf16 %v96, %v96
  %v98 = vld [vmem:[%s3] sm:$0xf]
  %v99 = vld [vmem:[%s3 + $0x4] sm:$0xf]
  %v100 = vld [vmem:[%s3 + $0x8] sm:$0xf]
  %v101 = vld [vmem:[%s3 + $0xc] sm:$0xf]
  %v102 = vld [vmem:[%s3 + $0x10] sm:$0xf]
  %v103 = vld [vmem:[%s3 + $0x14] sm:$0xf]
  %v104 = vld [vmem:[%s3 + $0x18] sm:$0xf]
  %v105 = vld [vmem:[%s3 + $0x1c] sm:$0xf]
  %v106 = vld [vmem:[%s4] sm:$0x1]
  %v108 = vlaneseq
  %v109 = vshrl.u32 %v108, 7
  %v110 = vsub.s32 0, %v109
  %v111 = vrot.slane %v106, %v110
  %v121 = vunpack.c.l.b16 %v98
  %v122 = vunpack.c.l.b16 %v99
  %v123 = vunpack.c.l.b16 %v100
  %v124 = vunpack.c.l.b16 %v101
  %v125 = vunpack.c.l.b16 %v102
  %v126 = vunpack.c.l.b16 %v103
  %v127 = vunpack.c.l.b16 %v104
  %v128 = vunpack.c.l.b16 %v105
  %v129 = vpack.c.b16 %v122, %v121
  %v130 = vpack.c.b16 %v124, %v123
  %v131 = vpack.c.b16 %v126, %v125
  %v132 = vpack.c.b16 %v128, %v127
  %vm137 = vcmask 523264
  %v139 = vsel %vm137, %v97, 0
  %141 = vmatprep.subr.bf16.mxu0 0
  %142 = vmatpush1.bf16.msra.mxu0 0
  %143 = vmatprep.subr.bf16.mxu0 0
  %144 = vmatpush1.bf16.msra.mxu0 0
  %145 = vmatprep.subr.bf16.mxu0 0
  %146 = vmatpush1.bf16.msra.mxu0 0
  %147 = vmatprep.subr.bf16.mxu0 0
  %148 = vmatpush1.bf16.msra.mxu0 0
  %149 = vmatprep.subr.bf16.mxu0 0
  %150 = vmatpush1.bf16.msra.mxu0 %v132
  %151 = vmatprep.subr.bf16.mxu0 0
  %152 = vmatpush1.bf16.msra.mxu0 %v131
  %153 = vmatprep.subr.bf16.mxu0 0
  %154 = vmatpush1.bf16.msra.mxu0 %v130
  %155 = vmatprep.subr.bf16.mxu0 0
  %156 = vmatpush1.bf16.msra.mxu0 %v129
  %157 = vmatprep.subr.bf16.mxu0 0
  %158 = vmatpush2.bf16.msra.mxu0 0
  %159 = vmatprep.subr.bf16.mxu0 0
  %160 = vmatpush2.bf16.msra.mxu0 0
  %161 = vmatprep.subr.bf16.mxu0 0
  %162 = vmatpush2.bf16.msra.mxu0 0
  %163 = vmatprep.subr.bf16.mxu0 0
  %164 = vmatpush2.bf16.msra.mxu0 0
  %165 = vmatprep.subr.bf16.mxu0 0
  %166 = vmatpush2.bf16.msra.mxu0 0
  %167 = vmatprep.subr.bf16.mxu0 0
  %168 = vmatpush2.bf16.msra.mxu0 0
  %169 = vmatprep.subr.bf16.mxu0 0
  %170 = vmatpush2.bf16.msra.mxu0 0
  %171 = vmatprep.subr.bf16.mxu0 0
  %172 = vmatpush2.bf16.msra.mxu0 0
  %173 = vmatprep.mubr.bf16.mxu0 0
  %174 = vmatmul.mubr.bf16.gmra.mxu0 %v139
  %v175 = vpop.f32.mrf.mxu0
  %v176 = vadd.f32 %v111, %v175
  %v177 = vpop.f32.mrf.mxu0
  %v178 = vpop.f32.mrf.mxu0
  %v179 = vpop.f32.mrf.mxu0
  %180 = vdwg.mxu0
  %v181 = vmax.f32 %v176, 0.0
  %v182 = vpack.c.bf16 %v181, %v181
  %v183 = vld [vmem:[%s5] sm:$0xf]
  %v184 = vld [vmem:[%s5 + $0x4] sm:$0xf]
  %v185 = vld [vmem:[%s5 + $0x8] sm:$0xf]
  %v186 = vld [vmem:[%s5 + $0xc] sm:$0xf]
  %v187 = vld [vmem:[%s5 + $0x10] sm:$0xf]
  %v188 = vld [vmem:[%s5 + $0x14] sm:$0xf]
  %v189 = vld [vmem:[%s5 + $0x18] sm:$0xf]
  %v190 = vld [vmem:[%s5 + $0x1c] sm:$0xf]
  %v191 = vld [vmem:[%s5 + $0x20] sm:$0xf]
  %v192 = vld [vmem:[%s5 + $0x24] sm:$0xf]
  %v193 = vld [vmem:[%s5 + $0x28] sm:$0xf]
  %v194 = vld [vmem:[%s5 + $0x2c] sm:$0xf]
  %v195 = vld [vmem:[%s5 + $0x30] sm:$0xf]
  %v196 = vld [vmem:[%s5 + $0x34] sm:$0xf]
  %v197 = vld [vmem:[%s5 + $0x38] sm:$0xf]
  %v198 = vld [vmem:[%s5 + $0x3c] sm:$0xf]
  %v199 = vld [vmem:[%s6] sm:$0x1]
  %v201 = vlaneseq
  %v202 = vshrl.u32 %v201, 7
  %v203 = vsub.s32 0, %v202
  %v204 = vrot.slane %v199, %v203
  %v222 = vunpack.c.l.b16 %v183
  %v223 = vunpack.c.l.b16 %v184
  %v224 = vunpack.c.l.b16 %v185
  %v225 = vunpack.c.l.b16 %v186
  %v226 = vunpack.c.l.b16 %v187
  %v227 = vunpack.c.l.b16 %v188
  %v228 = vunpack.c.l.b16 %v189
  %v229 = vunpack.c.l.b16 %v190
  %v230 = vunpack.c.l.b16 %v191
  %v231 = vunpack.c.l.b16 %v192
  %v232 = vunpack.c.l.b16 %v193
  %v233 = vunpack.c.l.b16 %v194
  %v234 = vunpack.c.l.b16 %v195
  %v235 = vunpack.c.l.b16 %v196
  %v236 = vunpack.c.l.b16 %v197
  %v237 = vunpack.c.l.b16 %v198
  %v238 = vpack.c.b16 %v223, %v222
  %v239 = vpack.c.b16 %v225, %v224
  %v240 = vpack.c.b16 %v227, %v226
  %v241 = vpack.c.b16 %v229, %v228
  %v242 = vpack.c.b16 %v231, %v230
  %v243 = vpack.c.b16 %v233, %v232
  %v244 = vpack.c.b16 %v235, %v234
  %v245 = vpack.c.b16 %v237, %v236
  %254 = vmatprep.subr.bf16.mxu0 0
  %255 = vmatpush1.bf16.msra.mxu0 %v245
  %256 = vmatprep.subr.bf16.mxu0 0
  %257 = vmatpush1.bf16.msra.mxu0 %v244
  %258 = vmatprep.subr.bf16.mxu0 0
  %259 = vmatpush1.bf16.msra.mxu0 %v243
  %260 = vmatprep.subr.bf16.mxu0 0
  %261 = vmatpush1.bf16.msra.mxu0 %v242
  %262 = vmatprep.subr.bf16.mxu0 0
  %263 = vmatpush1.bf16.msra.mxu0 %v241
  %264 = vmatprep.subr.bf16.mxu0 0
  %265 = vmatpush1.bf16.msra.mxu0 %v240
  %266 = vmatprep.subr.bf16.mxu0 0
  %267 = vmatpush1.bf16.msra.mxu0 %v239
  %268 = vmatprep.subr.bf16.mxu0 0
  %269 = vmatpush1.bf16.msra.mxu0 %v238
  %270 = vmatprep.subr.bf16.mxu0 0
  %271 = vmatpush2.bf16.msra.mxu0 0
  %272 = vmatprep.subr.bf16.mxu0 0
  %273 = vmatpush2.bf16.msra.mxu0 0
  %274 = vmatprep.subr.bf16.mxu0 0
  %275 = vmatpush2.bf16.msra.mxu0 0
  %276 = vmatprep.subr.bf16.mxu0 0
  %277 = vmatpush2.bf16.msra.mxu0 0
  %278 = vmatprep.subr.bf16.mxu0 0
  %279 = vmatpush2.bf16.msra.mxu0 0
  %280 = vmatprep.subr.bf16.mxu0 0
  %281 = vmatpush2.bf16.msra.mxu0 0
  %282 = vmatprep.subr.bf16.mxu0 0
  %283 = vmatpush2.bf16.msra.mxu0 0
  %284 = vmatprep.subr.bf16.mxu0 0
  %285 = vmatpush2.bf16.msra.mxu0 0
  %286 = vmatprep.mubr.bf16.mxu0 0
  %287 = vmatmul.mubr.bf16.gmra.mxu0 %v182
  %v288 = vpop.f32.mrf.mxu0
  %v289 = vadd.f32 %v204, %v288
  %v290 = vpop.f32.mrf.mxu0
  %v291 = vpop.f32.mrf.mxu0
  %v292 = vpop.f32.mrf.mxu0
  %293 = vdwg.mxu0
  %294 = vmax.xlane.f32.xlu0 %v289
  %v295 = vpop.xlane.xlu0 %294
  %v296 = vsub.f32 %v289, %v295
  %v297 = vmul.f32 %v296, 1.442695
  %v298 = vpow.pop %v297
  %299 = vadd.xlane.f32.xlu0 %v298
  %v300 = vpop.xlane.xlu0 %299
  %v301 = vrcp.pop %v300
  %v302 = vmul.f32 %v298, %v301
  %303 = vxpose.xlu0.b32.start [1/16] %v302, 128
  %304 = vxpose.xlu0.b32.cont [2/16] 0.0, 128
  %305 = vxpose.xlu0.b32.cont [3/16] 0.0, 128
  %306 = vxpose.xlu0.b32.cont [4/16] 0.0, 128
  %307 = vxpose.xlu0.b32.cont [5/16] 0.0, 128
  %308 = vxpose.xlu0.b32.cont [6/16] 0.0, 128
  %309 = vxpose.xlu0.b32.cont [7/16] 0.0, 128
  %310 = vxpose.xlu0.b32.cont [8/16] 0.0, 128
  %311 = vxpose.xlu0.b32.cont [9/16] 0.0, 128
  %312 = vxpose.xlu0.b32.cont [10/16] 0.0, 128
  %313 = vxpose.xlu0.b32.cont [11/16] 0.0, 128
  %314 = vxpose.xlu0.b32.cont [12/16] 0.0, 128
  %315 = vxpose.xlu0.b32.cont [13/16] 0.0, 128
  %316 = vxpose.xlu0.b32.cont [14/16] 0.0, 128
  %317 = vxpose.xlu0.b32.cont [15/16] 0.0, 128
  %318 = vxpose.xlu0.b32.end [16/16] 0.0, 128
  %v319 = vpop.trf.xlu0
  %v320 = vpop.trf.xlu0
  %v321 = vpop.trf.xlu0
  %v322 = vpop.trf.xlu0
  %v323 = vpop.trf.xlu0
  %v324 = vpop.trf.xlu0
  %v325 = vpop.trf.xlu0
  %v326 = vpop.trf.xlu0
  %v327 = vpop.trf.xlu0
  %v328 = vpop.trf.xlu0
  %v329 = vpop.trf.xlu0
  %v330 = vpop.trf.xlu0
  %v331 = vpop.trf.xlu0
  %v332 = vpop.trf.xlu0
  %v333 = vpop.trf.xlu0
  %v334 = vpop.trf.xlu0
  %vm335 = vcmask 64512
  %336 = vst.msk [vmem:[%s7] sm:$0xff] %vm335, %v319
  // Predicated region
  $region30: #{policy_net_forward.1} parent=0 // pred_check
    _
  $region31: #{policy_net_forward.1} parent=0 // pred_check_branch
    %338 = sbr.rel (0) target = $region33
  $region32: #{policy_net_forward.1} parent=0 // pred_region
    _
  $region33: #{policy_net_forward.1} parent=0 // pred_fallthru
    _
  // Predicated region
  $region34: #{policy_net_forward.1} parent=0 // pred_check
    _
  $region35: #{policy_net_forward.1} parent=0 // pred_check_branch
    %340 = sbr.rel (0) target = $region37
  $region36: #{policy_net_forward.1} parent=0 // pred_region
    _
  $region37: #{policy_net_forward.1} parent=0 // pred_fallthru
    _

</llo_original>
